<compile_context>
chip_gen: v6e
topology: v6e:2x2x1
jax: 0.10.0
libtpu: 0.0.40
codegen_flags: <defaults>
</compile_context>

<pallas_src>
import math
import jax
import jax.numpy as jnp
from jax.experimental import pallas as pl
from jax.experimental.pallas import tpu as pltpu


def _round_up(n: int, m: int) -> int:
    return ((n + m - 1) // m) * m


def _round_down(n: int, m: int) -> int:
    return (n // m) * m


def _sublane_granule(dtype) -> int:
    # 32-bit -> 8 rows, 16-bit -> 16 rows, 8-bit -> 32 rows (packed sublanes).
    itemsize = jnp.dtype(dtype).itemsize
    return max(8, 32 // max(itemsize, 1))


def _vmem_capacity_bytes() -> int:
    """Per-TensorCore physical VMEM; conservative fallback if query fails."""
    try:
        return int(pltpu.get_tpu_info().vmem_capacity_bytes)
    except Exception:
        return 64 * 1024 * 1024  # v7x per-TC size (the smallest generation)


def _one_to_one_kernel(x_ref, w_ref, b_ref, o_ref):
    """One grid step handles one (batch-tile, feature-tile) block.

    x_ref: (TILE_B, TILE_F)  input tile in VMEM
    w_ref: (1, TILE_F)       weight row (broadcast over the batch tile)
    b_ref: (1, TILE_F)       bias row   (broadcast over the batch tile)
    o_ref: (TILE_B, TILE_F)  output tile (feature axis last -> lane-dense)
    """
    o_ref[...] = (x_ref[...] * w_ref[...] + b_ref[...]).astype(o_ref.dtype)


def one_to_one_linear_forward(x, weight, bias, *, tile_b: int = 1024,
                              tile_f: int = 2048, out_dtype=None):
    """x: (B, F), weight/bias: (F,) -> (B, F) = x * w + b (per-feature affine)."""
    B, F = x.shape
    assert weight.shape == (F,) and bias.shape == (F,)
    out_dtype = out_dtype if out_dtype is not None else x.dtype

    # Present params as (1, F) rows in the compute dtype so they broadcast
    # over the batch tile with no in-kernel casts of the big operand.
    w2 = weight.reshape(1, F).astype(x.dtype)
    b2 = bias.reshape(1, F).astype(x.dtype)

    # dtype-aware sublane granule (bf16 -> 16, int8/fp8 -> 32).
    granule = max(_sublane_granule(x.dtype), _sublane_granule(out_dtype))

    # ---- feature (lane) tiling: keep blocks lane-dense ----
    if F % 128 == 0:
        tile_f = min(F, max(128, _round_down(tile_f, 128)))
    else:
        # Full-extent feature block is always a legal BlockSpec; single lane
        # block, stores masked only at the ragged lane edge.
        tile_f = F
        # TODO(synk): pad F to a multiple of 128 at the call site if this
        # ragged-lane path ever becomes hot.

    # ---- generation-aware VMEM budgeting ----
    vmem_cap = _vmem_capacity_bytes()
    budget = int(vmem_cap * 0.70)        # headroom for Mosaic scratch/sems

    x_bytes = jnp.dtype(x.dtype).itemsize
    o_bytes = jnp.dtype(out_dtype).itemsize
    # Dominant residency: double-buffered x tile + out tile.
    per_row_bytes = 2 * tile_f * (x_bytes + o_bytes)
    max_tile_b = max(granule, _round_down(budget // max(per_row_bytes, 1), granule))
    tile_b = max(granule, min(_round_up(tile_b, granule), max_tile_b))

    # ---- guarantee >=2 batch steps so both v7x TensorCores get work ----
    if B > granule and pl.cdiv(B, tile_b) < 2:
        tile_b = max(granule, _round_up(pl.cdiv(B, 2), granule))

    # Never larger than the (granule-rounded) batch itself.
    tile_b = min(tile_b, _round_up(B, granule))

    grid = (pl.cdiv(B, tile_b), pl.cdiv(F, tile_f))

    # Scoped-VMEM request: what the tiles actually need, plus margin, capped
    # at the generation-aware budget (never the full physical VMEM).
    needed = (2 * tile_b * tile_f * (x_bytes + o_bytes)     # x + out, 2 buffers
              + 4 * tile_f * x_bytes                        # weight/bias rows
              + (4 << 20))                                  # internal-scratch margin
    vmem_limit = int(min(budget, max(needed, 8 << 20)))

    return pl.pallas_call(
        _one_to_one_kernel,
        out_shape=jax.ShapeDtypeStruct((B, F), out_dtype),
        grid_spec=pltpu.PrefetchScalarGridSpec(
            num_scalar_prefetch=0,
            grid=grid,
            in_specs=[
                pl.BlockSpec((tile_b, tile_f), lambda i, j: (i, j)),  # x tile
                pl.BlockSpec((1, tile_f), lambda i, j: (0, j)),       # weight row
                pl.BlockSpec((1, tile_f), lambda i, j: (0, j)),       # bias row
            ],
            out_specs=pl.BlockSpec((tile_b, tile_f), lambda i, j: (i, j)),
        ),
        compiler_params=pltpu.CompilerParams(
            # Both axes are independent elementwise tiles -> fully parallel;
            # batch axis shards across v7x's two TensorCores.
            dimension_semantics=("parallel", "parallel"),
            vmem_limit_bytes=vmem_limit,
        ),
    )(x, w2, b2)


def _reference_forward(x, weight, bias):
    # Pure-JAX reference mirroring the PyTorch module exactly:
    # matmul(x, diag(w)) + b  ==  x * w + b  (broadcast over batch).
    return x * weight[None, :] + bias[None, :]


if __name__ == "__main__":
    key = jax.random.PRNGKey(0)
    kx, kw, kb, kx2 = jax.random.split(key, 4)

    # Small shapes consistent with the module: x is (batch, features).
    batch = 8
    features = 128

    # Deterministic init matching OneToOneLinear.reset_parameters:
    # uniform(-1/sqrt(F), 1/sqrt(F)) for both weight and bias.
    bound = 1.0 / math.sqrt(features)
    x = jax.random.normal(kx, (batch, features), dtype=jnp.float32)
    weight = jax.random.uniform(kw, (features,), dtype=jnp.float32,
                                minval=-bound, maxval=bound)
    bias = jax.random.uniform(kb, (features,), dtype=jnp.float32,
                              minval=-bound, maxval=bound)

    out = jax.block_until_ready(one_to_one_linear_forward(x, weight, bias))
    ref = _reference_forward(x, weight, bias)
    assert out.shape == (batch, features)
    assert jnp.allclose(out, ref, atol=1e-6, rtol=1e-6)

    # Ragged batch: exercises boundary-masked blocks (no pad/slice copies)
    # and a multi-step parallel batch grid.
    batch2 = 1000
    x2 = jax.random.normal(kx2, (batch2, features), dtype=jnp.float32)
    out2 = jax.block_until_ready(
        one_to_one_linear_forward(x2, weight, bias, tile_b=256))
    ref2 = _reference_forward(x2, weight, bias)
    assert out2.shape == (batch2, features)
    assert jnp.allclose(out2, ref2, atol=1e-6, rtol=1e-6)

    # bf16 I/O path: halves HBM bytes; exercises the 16-row sublane granule.
    xb = x2.astype(jnp.bfloat16)
    outb = jax.block_until_ready(
        one_to_one_linear_forward(xb, weight, bias, out_dtype=jnp.bfloat16))
    refb = xb.astype(jnp.float32) * weight[None, :] + bias[None, :]
    assert outb.shape == (batch2, features)
    assert jnp.allclose(outb.astype(jnp.float32), refb, atol=2e-2, rtol=2e-2)

    print("KERNEL_OK")
</pallas_src>

<mosaic_0001>
module attributes {stable_mosaic.version = 11 : i64} {
  func.func @_one_to_one_kernel(%arg0: i32, %arg1: i32, %arg2: memref<8x128xf32, #tpu.memory_space<vmem>>, %arg3: memref<1x128xf32, #tpu.memory_space<vmem>>, %arg4: memref<1x128xf32, #tpu.memory_space<vmem>>, %arg5: memref<8x128xf32, #tpu.memory_space<vmem>>) attributes {dimension_semantics = [#tpu.dimension_semantics<parallel>, #tpu.dimension_semantics<parallel>], iteration_bounds = array<i64: 1, 1>, scalar_prefetch = 0 : i64, scratch_operands = 0 : i64, tpu.core_type = #tpu.core_type<tc>, window_params = [{transform_indices = @transform_0, window_bounds = array<i64: 8, 128>}, {transform_indices = @transform_1, window_bounds = array<i64: 1, 128>}, {transform_indices = @transform_2, window_bounds = array<i64: 1, 128>}, {transform_indices = @transform_3, window_bounds = array<i64: 8, 128>}]} {
    %c0 = arith.constant 0 : index
    %c0_0 = arith.constant 0 : index
    %0 = vector.load %arg2[%c0, %c0_0] : memref<8x128xf32, #tpu.memory_space<vmem>>, vector<8x128xf32>
    %c0_1 = arith.constant 0 : index
    %c0_2 = arith.constant 0 : index
    %1 = vector.load %arg3[%c0_1, %c0_2] : memref<1x128xf32, #tpu.memory_space<vmem>>, vector<1x128xf32>
    %2 = vector.broadcast %1 : vector<1x128xf32> to vector<8x128xf32>
    %3 = arith.mulf %0, %2 : vector<8x128xf32>
    %c0_3 = arith.constant 0 : index
    %c0_4 = arith.constant 0 : index
    %4 = vector.load %arg4[%c0_3, %c0_4] : memref<1x128xf32, #tpu.memory_space<vmem>>, vector<1x128xf32>
    %5 = vector.broadcast %4 : vector<1x128xf32> to vector<8x128xf32>
    %6 = arith.addf %3, %5 : vector<8x128xf32>
    %c0_5 = arith.constant 0 : index
    %c0_6 = arith.constant 0 : index
    %7 = vector.load %arg5[%c0_5, %c0_6] : memref<8x128xf32, #tpu.memory_space<vmem>>, vector<8x128xf32>
    tpu.vector_store %arg5[%c0_5, %c0_6], %6 {strides = array<i32>} : memref<8x128xf32, #tpu.memory_space<vmem>>, vector<8x128xf32>,
    return
  }
  func.func @transform_0(%arg0: i32, %arg1: i32) -> (i32, i32) {
    %c0_i32 = arith.constant 0 : i32
    return %arg0, %arg1 : i32, i32
  }
  func.func @transform_1(%arg0: i32, %arg1: i32) -> (i32, i32) {
    %c0_i32 = arith.constant 0 : i32
    %c0_i32_0 = arith.constant 0 : i32
    return %c0_i32, %arg1 : i32, i32
  }
  func.func @transform_2(%arg0: i32, %arg1: i32) -> (i32, i32) {
    %c0_i32 = arith.constant 0 : i32
    %c0_i32_0 = arith.constant 0 : i32
    return %c0_i32, %arg1 : i32, i32
  }
  func.func @transform_3(%arg0: i32, %arg1: i32) -> (i32, i32) {
    %c0_i32 = arith.constant 0 : i32
    return %arg0, %arg1 : i32, i32
  }
}

</mosaic_0001>

<llo_original>
// kernel: tpu_custom_call.1
$region0: #{tpu_custom_call.1}
  #allocation0 [shape = 'u32[]', space=smem, size = 0x4, offset = 0x4, fixed_abs, tag = 'smem constant byte address 0x4 - core index']
  #allocation1 [shape = 'u32[144,128]{1,0:T(1,128)}', space=vmem, size = 0x12000, scoped, tag = 'internal scratch']
  %s0 = inlined_call_operand.hbm [shape: f32[8,128], index: 0, kind: input, shape index: {}]
  %s1 = inlined_call_operand.vmem [shape: f32[1,128], index: 1, kind: input, shape index: {}]
  %s2 = inlined_call_operand.vmem [shape: f32[1,128], index: 2, kind: input, shape index: {}]
  %s3 = inlined_call_operand.hbm [shape: f32[8,128], index: 3, kind: output, shape index: {}]
  %s4 = sld [smem:[#allocation0]]
  $region26: #{tpu_custom_call.1} parent=0
    _
  %s6 = ssub.s32 1, %s4
  %s7 = scalar_select 0, %s6, %s4
  $region1: #{tpu_custom_call.1} parent=0
    #allocation2 [shape = 'u8[4096]{0}', space=vmem, size = 0x1000, scoped, tag = 'input window, operand 0, single buffered']
    #allocation3 [shape = 's32[1]{0}', space=sflag, size = 0x4, scoped, tag = 'scoped memory for tpu_custom_call.1']
    #allocation4 [shape = 's32[1]{0}', space=sflag, size = 0x4, scoped, tag = 'scoped memory for tpu_custom_call.1']
    #allocation5 [shape = 'u8[4096]{0}', space=vmem, size = 0x1000, scoped, tag = 'output window, operand 0, single buffered']
    %8 = vsyncpa [#allocation3], 0
    %9 = vsyncpa [#allocation4], 0
    // Predicated region
    $region2: #{tpu_custom_call.1} parent=1 // pred_check
      _
    $region3: #{tpu_custom_call.1} parent=1 // pred_check_branch
      %11 = sbr.rel (0) target = $region5
    $region4: #{tpu_custom_call.1} parent=1 // pred_region
      %s13 = ssub.s32 128, 128
      %14 = vsyncadd [#allocation3], %s13
      %s16 = sshll.u32 [#allocation2], 4
      %s17 = int_to_ptr.vmem [resolvable:$true] %s16
      %19 = dma.hbm_to_vmem [thread:$0]  %s0, 128, %s17, [#allocation3]
    $region5: #{tpu_custom_call.1} parent=1 // pred_fallthru
      _
    // Predicated region
    $region6: #{tpu_custom_call.1} parent=1 // pred_check
      _
    $region7: #{tpu_custom_call.1} parent=1 // pred_check_branch
      %21 = sbr.rel (0) target = $region9
    $region8: #{tpu_custom_call.1} parent=1 // pred_region
      _
    $region9: #{tpu_custom_call.1} parent=1 // pred_fallthru
      _
    // Predicated region
    $region10: #{tpu_custom_call.1} parent=1 // pred_check
      _
    $region11: #{tpu_custom_call.1} parent=1 // pred_check_branch
      %23 = sbr.rel (0) target = $region13
    $region12: #{tpu_custom_call.1} parent=1 // pred_region
      _
    $region13: #{tpu_custom_call.1} parent=1 // pred_fallthru
      _
    // Predicated region
    $region14: #{tpu_custom_call.1} parent=1 // pred_check
      _
    $region15: #{tpu_custom_call.1} parent=1 // pred_check_branch
      %25 = sbr.rel (0) target = $region17
    $region16: #{tpu_custom_call.1} parent=1 // pred_region
      %26 = dma.done [#allocation3], 128
    $region17: #{tpu_custom_call.1} parent=1 // pred_fallthru
      _
    %v27 = vld [vmem:[#allocation2] sm:$0xff]
    %v28 = vld [vmem:[%s1] sm:$0x1]
    %v30 = vlaneseq
    %v31 = vshrl.u32 %v30, 7
    %v32 = vsub.s32 0, %v31
    %v33 = vrot.slane %v28, %v32
    %v35 = vmul.f32 %v27, %v33
    %v36 = vld [vmem:[%s2] sm:$0x1]
    %v38 = vlaneseq
    %v39 = vshrl.u32 %v38, 7
    %v40 = vsub.s32 0, %v39
    %v41 = vrot.slane %v36, %v40
    %v43 = vadd.f32 %v35, %v41
    %44 = vst [vmem:[#allocation5] sm:$0xff] %v43
    // Predicated region
    $region18: #{tpu_custom_call.1} parent=1 // pred_check
      _
    $region19: #{tpu_custom_call.1} parent=1 // pred_check_branch
      %46 = sbr.rel (0) target = $region21
    $region20: #{tpu_custom_call.1} parent=1 // pred_region
      %s48 = ssub.s32 128, 128
      %49 = vsyncadd [#allocation4], %s48
      %s51 = sshll.u32 [#allocation5], 4
      %s52 = int_to_ptr.vmem [resolvable:$true] %s51
      %54 = dma.vmem_to_hbm [thread:$0]  %s52, 128, %s3, [#allocation4]
    $region21: #{tpu_custom_call.1} parent=1 // pred_fallthru
      _
    // Predicated region
    $region22: #{tpu_custom_call.1} parent=1 // pred_check
      _
    $region23: #{tpu_custom_call.1} parent=1 // pred_check_branch
      %56 = sbr.rel (0) target = $region25
    $region24: #{tpu_custom_call.1} parent=1 // pred_region
      %57 = dma.done [#allocation4], 128
    $region25: #{tpu_custom_call.1} parent=1 // pred_fallthru
      _
    %58 = vsyncpa [#allocation3], 1
    %59 = vsyncpa [#allocation4], 1

</llo_original>
